<compile_context>
chip_gen: v5e
topology: v5e:2x2
jax: 0.10.0
libtpu: 0.0.40
codegen_flags: <defaults>
</compile_context>

<pallas_src>
import functools

import jax
import jax.numpy as jnp
from jax import lax
from jax.experimental import pallas as pl
from jax.experimental.pallas import tpu as pltpu


def _round_up(x, m):
    return (x + m - 1) // m * m


_VMEM_LIMIT = 48 * 1024 * 1024        # <= v7x 64 MiB physical; fine on v5e/v6e


# --------------------------------------------------------------------------
# Pass 1a (batch_norm=True): conv-as-GEMM (lane-dense) + accumulated BN stats
# --------------------------------------------------------------------------
def _conv_stats_kernel(p_ref, w_ref, b_ref, y_ref, s1_ref, s2_ref, *,
                       n_pad, valid_last):
    # p_ref: (CKKp, tile_r) bf16   w_ref: (Cp, CKKp) bf16   b_ref: (Cp, 1) f32
    r = pl.program_id(1)
    last = pl.num_programs(1) - 1

    y = jnp.dot(w_ref[...], p_ref[...], preferred_element_type=jnp.float32)
    y = y + b_ref[...]                                   # conv bias
    y_ref[...] = y                                       # (Cp, tile_r) f32

    # Per-channel sum / sum-of-squares, accumulated across the row-tile axis
    # directly in the (VMEM-resident) stats output blocks -> the narrow (Cp,1)
    # HBM writeback happens once per batch element, not once per tile.
    @pl.when(r == 0)
    def _():
        s1_ref[...] = jnp.zeros_like(s1_ref)
        s2_ref[...] = jnp.zeros_like(s2_ref)

    def _accum(yv):
        s1_ref[...] += jnp.sum(yv, axis=1, keepdims=True)
        s2_ref[...] += jnp.sum(yv * yv, axis=1, keepdims=True)

    if n_pad > 0:
        # Only the last row tile contains zero-padded rows: interior tiles
        # skip the iota/compare/where filler entirely.
        @pl.when(r != last)
        def _():
            _accum(y)

        @pl.when(r == last)
        def _():
            lane = lax.broadcasted_iota(jnp.int32, y.shape, 1)
            _accum(jnp.where(lane < valid_last, y, 0.0))
    else:
        _accum(y)


def _conv_stats_pass(patches, w2, bias, *, B, Cp, CKKp, R, Rp, tile_r):
    n_tiles = Rp // tile_r
    kernel = functools.partial(_conv_stats_kernel, n_pad=Rp - R,
                               valid_last=R - (n_tiles - 1) * tile_r)
    flops = 2 * B * Rp * CKKp * Cp
    bytes_accessed = (patches.nbytes + w2.nbytes + bias.nbytes
                      + B * Cp * Rp * 4 + 2 * B * Cp * 4)
    return pl.pallas_call(
        kernel,
        out_shape=(
            jax.ShapeDtypeStruct((B, Cp, Rp), jnp.float32),
            jax.ShapeDtypeStruct((B, Cp, 1), jnp.float32),
            jax.ShapeDtypeStruct((B, Cp, 1), jnp.float32),
        ),
        grid=(B, n_tiles),
        in_specs=[
            pl.BlockSpec((None, CKKp, tile_r), lambda b, r: (b, 0, r)),
            pl.BlockSpec((Cp, CKKp), lambda b, r: (0, 0)),
            pl.BlockSpec((Cp, 1), lambda b, r: (0, 0)),
        ],
        out_specs=(
            pl.BlockSpec((None, Cp, tile_r), lambda b, r: (b, 0, r)),
            pl.BlockSpec((None, Cp, 1), lambda b, r: (b, 0, 0)),   # accumulator
            pl.BlockSpec((None, Cp, 1), lambda b, r: (b, 0, 0)),   # accumulator
        ),
        compiler_params=pltpu.CompilerParams(
            dimension_semantics=("parallel", "arbitrary"),
            vmem_limit_bytes=_VMEM_LIMIT),
        cost_estimate=pl.CostEstimate(flops=flops, transcendentals=0,
                                      bytes_accessed=bytes_accessed),
    )(patches, w2, bias)


# --------------------------------------------------------------------------
# Pass 1b (batch_norm=False): conv + bias + activation fully fused (no pass 2)
# --------------------------------------------------------------------------
def _conv_act_kernel(p_ref, w_ref, b_ref, y_ref, a_ref, *, use_relu):
    y = jnp.dot(w_ref[...], p_ref[...], preferred_element_type=jnp.float32)
    y = y + b_ref[...]
    y_ref[...] = y
    a = jnp.maximum(y, 0.0) if use_relu else y
    a_ref[...] = a.astype(a_ref.dtype)


def _conv_act_pass(patches, w2, bias, *, B, Cp, CKKp, Rp, tile_r, use_relu):
    n_tiles = Rp // tile_r
    kernel = functools.partial(_conv_act_kernel, use_relu=use_relu)
    flops = 2 * B * Rp * CKKp * Cp
    bytes_accessed = (patches.nbytes + w2.nbytes + bias.nbytes
                      + B * Cp * Rp * (4 + 2))
    return pl.pallas_call(
        kernel,
        out_shape=(
            jax.ShapeDtypeStruct((B, Cp, Rp), jnp.float32),
            jax.ShapeDtypeStruct((B, Cp, Rp), jnp.bfloat16),
        ),
        grid=(B, n_tiles),
        in_specs=[
            pl.BlockSpec((None, CKKp, tile_r), lambda b, r: (b, 0, r)),
            pl.BlockSpec((Cp, CKKp), lambda b, r: (0, 0)),
            pl.BlockSpec((Cp, 1), lambda b, r: (0, 0)),
        ],
        out_specs=(
            pl.BlockSpec((None, Cp, tile_r), lambda b, r: (b, 0, r)),
            pl.BlockSpec((None, Cp, tile_r), lambda b, r: (b, 0, r)),
        ),
        compiler_params=pltpu.CompilerParams(
            dimension_semantics=("parallel", "parallel"),
            vmem_limit_bytes=_VMEM_LIMIT),
        cost_estimate=pl.CostEstimate(flops=flops, transcendentals=0,
                                      bytes_accessed=bytes_accessed),
    )(patches, w2, bias)


# --------------------------------------------------------------------------
# Pass 2 (batch_norm=True only): apply scale/shift (+ relu), bf16 outputs
# --------------------------------------------------------------------------
def _bn_relu_kernel(y_ref, sc_ref, sh_ref, bn_ref, act_ref):
    yb = y_ref[...] * sc_ref[...] + sh_ref[...]
    bn_ref[...] = yb.astype(bn_ref.dtype)
    act_ref[...] = jnp.maximum(yb, 0.0).astype(act_ref.dtype)


def _bn_only_kernel(y_ref, sc_ref, sh_ref, bn_ref):
    bn_ref[...] = (y_ref[...] * sc_ref[...] + sh_ref[...]).astype(bn_ref.dtype)


def _bn_act_pass(y, scale, shift, *, B, Cp, Rp, tile_r, use_relu):
    n_tiles = Rp // tile_r
    n_out = 2 if use_relu else 1
    out_shape = tuple(jax.ShapeDtypeStruct((B, Cp, Rp), jnp.bfloat16)
                      for _ in range(n_out))
    out_specs = tuple(pl.BlockSpec((None, Cp, tile_r), lambda b, r: (b, 0, r))
                      for _ in range(n_out))
    outs = pl.pallas_call(
        _bn_relu_kernel if use_relu else _bn_only_kernel,
        out_shape=out_shape,
        grid=(B, n_tiles),
        in_specs=[
            pl.BlockSpec((None, Cp, tile_r), lambda b, r: (b, 0, r)),
            pl.BlockSpec((Cp, 1), lambda b, r: (0, 0)),
            pl.BlockSpec((Cp, 1), lambda b, r: (0, 0)),
        ],
        out_specs=out_specs,
        compiler_params=pltpu.CompilerParams(
            dimension_semantics=("parallel", "parallel"),
            vmem_limit_bytes=_VMEM_LIMIT),
    )(y, scale, shift)
    if use_relu:
        return outs[0], outs[1]
    return outs[0], outs[0]        # nonlinearity == linear: act aliases bn


# --------------------------------------------------------------------------
# One CNN layer: Conv2d -> (BatchNorm2d) -> activation
# --------------------------------------------------------------------------
def _conv_bn_act_layer(x, w, b, gamma, beta, *, stride, padding, eps,
                       batch_norm, use_relu, tile_r_max=2048):
    assert tile_r_max % 128 == 0, "tile_r_max must be a multiple of 128"
    B, C_in, T, F = x.shape
    C_out, _, K, _ = w.shape
    T_out = (T + 2 * padding - K) // stride + 1
    F_out = (F + 2 * padding - K) // stride + 1
    R = T_out * F_out
    CKK = C_in * K * K
    # bf16 packs 16 rows per sublane group: pad to 16 to avoid relayout copies.
    Cp = _round_up(C_out, 16)
    CKKp = _round_up(CKK, 16)

    # Row-tile size: as large as possible to amortize ~0.35us per grid step,
    # but budgeted so double-buffered blocks stay well inside v7x's 64 MiB VMEM.
    bytes_per_row = CKKp * 2 + Cp * (4 + 4 + 2 + 2)      # patches + y + bn/act
    vmem_rows = max(128, (24 * 1024 * 1024 // (2 * bytes_per_row)) // 128 * 128)
    tile_r = min(tile_r_max, vmem_rows, _round_up(R, 128))
    assert tile_r % 128 == 0
    Rp = _round_up(R, tile_r)

    # ---- im2col via K*K strided slices (no XLA gather), directly into the
    # ---- (contraction, rows) layout so the GEMM output is already NCHW.
    # TODO(synk): fuse im2col into the kernel to remove the K^2 HBM inflation.
    x_pad = jnp.pad(x.astype(jnp.bfloat16),
                    ((0, 0), (0, 0), (padding, padding), (padding, padding)))
    parts = []
    for kt in range(K):
        for kf in range(K):
            parts.append(lax.slice(
                x_pad, (0, 0, kt, kf),
                (B, C_in, kt + (T_out - 1) * stride + 1,
                 kf + (F_out - 1) * stride + 1),
                (1, 1, stride, stride)))          # (B, C_in, T_out, F_out)
    patches = jnp.stack(parts, axis=2)            # (B, C_in, K*K, To, Fo)
    patches = patches.reshape(B, CKK, R)
    patches = jnp.pad(patches, ((0, 0), (0, CKKp - CKK), (0, Rp - R)))

    w2 = jnp.pad(w.reshape(C_out, CKK),
                 ((0, Cp - C_out), (0, CKKp - CKK))).astype(jnp.bfloat16)
    b2 = jnp.pad(b.astype(jnp.float32), (0, Cp - C_out)).reshape(Cp, 1)

    def unpad(yp):
        return yp[:, :C_out, :R].reshape(B, C_out, T_out, F_out)

    if not batch_norm:
        # Fully fused single pass (no second HBM round trip).
        y_conv_p, y_act_p = _conv_act_pass(patches, w2, b2, B=B, Cp=Cp,
                                           CKKp=CKKp, Rp=Rp, tile_r=tile_r,
                                           use_relu=use_relu)
        return unpad(y_conv_p), None, unpad(y_act_p)

    # ---- pass 1: conv GEMM + accumulated per-channel statistics ------------
    y_conv_p, s1, s2 = _conv_stats_pass(patches, w2, b2, B=B, Cp=Cp,
                                        CKKp=CKKp, R=R, Rp=Rp, tile_r=tile_r)

    # ---- BN finalize (O(C) work, plain JAX) ---------------------------------
    # TODO(synk): E[x^2]-E[x]^2 can cancel for large means; fine for
    # zero-mean-ish activations, a Welford pass would be safer in general.
    n = B * R
    mean = jnp.sum(s1, axis=(0, 2)) / n
    var = jnp.maximum(jnp.sum(s2, axis=(0, 2)) / n - mean * mean, 0.0)  # biased
    g = jnp.pad(gamma.astype(jnp.float32), (0, Cp - C_out), constant_values=1.0)
    be = jnp.pad(beta.astype(jnp.float32), (0, Cp - C_out))
    scale = g * lax.rsqrt(var + eps)
    shift = be - mean * scale

    # ---- pass 2: normalize + activation (bf16 outputs) ----------------------
    y_bn_p, y_act_p = _bn_act_pass(y_conv_p, scale.reshape(Cp, 1),
                                   shift.reshape(Cp, 1), B=B, Cp=Cp, Rp=Rp,
                                   tile_r=tile_r, use_relu=use_relu)
    return unpad(y_conv_p), unpad(y_bn_p), unpad(y_act_p)


def _flatten(y):
    B, C, T, F = y.shape
    # Hidden outputs are returned in f32 (module semantics); cast fuses into
    # the (required) transpose/reshape copy.
    return y.transpose(0, 2, 1, 3).reshape(B, T, C * F).astype(jnp.float32)


def _update_lengths(lengths, *, kernel_size, stride, padding, dilation=1):
    new = (lengths.astype(jnp.float32) + 2 * padding
           - dilation * (kernel_size - 1) - 1) / stride + 1
    return jnp.maximum(jnp.floor(new), 1.0).astype(lengths.dtype)


# --------------------------------------------------------------------------
# Full CNN.forward(feature, lengths) -> list of (flattened hidden, lengths)
# --------------------------------------------------------------------------
def cnn_forward(feature, lengths, params, *, in_channel, freq_dim,
                kernel_size=3, stride=2, padding=1, batch_norm=False,
                nonlinearity="linear", eps=1e-5):
    B, T, _ = feature.shape
    x = feature.reshape(B, T, in_channel, freq_dim).transpose(0, 2, 1, 3)
    use_relu = (nonlinearity == "relu")
    hidden_outputs = []
    for (w, b, gamma, beta) in params:
        y_conv, y_bn, y_act = _conv_bn_act_layer(
            x, w, b, gamma, beta, stride=stride, padding=padding, eps=eps,
            batch_norm=batch_norm, use_relu=use_relu)
        lengths = _update_lengths(lengths, kernel_size=kernel_size,
                                  stride=stride, padding=padding)
        hidden_outputs.append((_flatten(y_conv), lengths))    # after conv
        if batch_norm:
            hidden_outputs.append((_flatten(y_bn), lengths))  # after BN
        hidden_outputs.append((_flatten(y_act), lengths))     # after nonlin
        x = y_act                                 # bf16, feeds next layer
    return hidden_outputs


# --------------------------------------------------------------------------
# Pure-JAX reference (bf16 matmul inputs, f32 accumulation)
# --------------------------------------------------------------------------
def _reference_forward(feature, lengths, params, *, in_channel, freq_dim,
                       kernel_size, stride, padding, batch_norm, nonlinearity,
                       eps):
    B, T, _ = feature.shape
    x = feature.reshape(B, T, in_channel, freq_dim).transpose(0, 2, 1, 3)
    use_relu = (nonlinearity == "relu")

    def flat(y):
        b, c, t, f = y.shape
        return y.transpose(0, 2, 1, 3).reshape(b, t, c * f)

    outs = []
    for (w, b, gamma, beta) in params:
        y = lax.conv_general_dilated(
            x.astype(jnp.bfloat16), w.astype(jnp.bfloat16),
            (stride, stride), [(padding, padding), (padding, padding)],
            dimension_numbers=("NCHW", "OIHW", "NCHW"),
            preferred_element_type=jnp.float32)
        y = y + b.reshape(1, -1, 1, 1)
        y_conv = y
        if batch_norm:
            mean = jnp.mean(y, axis=(0, 2, 3), keepdims=True)
            var = jnp.mean((y - mean) ** 2, axis=(0, 2, 3), keepdims=True)
            y = (y - mean) * lax.rsqrt(var + eps)
            y = y * gamma.reshape(1, -1, 1, 1) + beta.reshape(1, -1, 1, 1)
        y_bn = y
        y_act = jnp.maximum(y, 0.0) if use_relu else y
        lengths = _update_lengths(lengths, kernel_size=kernel_size,
                                  stride=stride, padding=padding)
        outs.append((flat(y_conv), lengths))
        if batch_norm:
            outs.append((flat(y_bn), lengths))
        outs.append((flat(y_act), lengths))
        x = y_act
    return outs


if __name__ == "__main__":
    # CNN(freq_dim=16, in_channel=4, hidden_channel=8, num_layers=2,
    #     kernel_size=3, stride=2, batch_norm=True, nonlinearity='relu')
    freq_dim, in_channel, hidden_channel = 16, 4, 8
    num_layers, kernel_size, stride, padding = 2, 3, 2, 1
    batch_norm, nonlinearity, eps = True, "relu", 1e-5
    B, T = 2, 16

    key = jax.random.PRNGKey(0)
    keys = jax.random.split(key, 2 * num_layers + 1)
    feature = jax.random.normal(keys[0], (B, T, in_channel * freq_dim),
                                dtype=jnp.float32)
    lengths = jnp.array([16, 12], dtype=jnp.int32)

    params = []
    c_in = in_channel
    for l in range(num_layers):
        w = jax.random.normal(
            keys[2 * l + 1],
            (hidden_channel, c_in, kernel_size, kernel_size), jnp.float32) * 0.1
        b = jax.random.normal(keys[2 * l + 2], (hidden_channel,),
                              jnp.float32) * 0.1
        gamma = jnp.ones((hidden_channel,), jnp.float32)   # BatchNorm2d init
        beta = jnp.zeros((hidden_channel,), jnp.float32)
        params.append((w, b, gamma, beta))
        c_in = hidden_channel

    outs = cnn_forward(feature, lengths, params, in_channel=in_channel,
                       freq_dim=freq_dim, kernel_size=kernel_size,
                       stride=stride, padding=padding, batch_norm=batch_norm,
                       nonlinearity=nonlinearity, eps=eps)
    jax.block_until_ready([o for o, _ in outs])

    refs = _reference_forward(feature, lengths, params, in_channel=in_channel,
                              freq_dim=freq_dim, kernel_size=kernel_size,
                              stride=stride, padding=padding,
                              batch_norm=batch_norm, nonlinearity=nonlinearity,
                              eps=eps)

    assert len(outs) == len(refs)
    for (o, ol), (r, rl) in zip(outs, refs):
        assert o.shape == r.shape, (o.shape, r.shape)
        assert jnp.allclose(o, r, atol=2e-2, rtol=2e-2), \
            float(jnp.max(jnp.abs(o - r)))
        assert jnp.array_equal(ol, rl)

    print("KERNEL_OK")
</pallas_src>

<mosaic_0001>
module attributes {stable_mosaic.version = 11 : i64} {
  func.func @_conv_stats_kernel(%arg0: i32, %arg1: i32, %arg2: memref<1x48x128xbf16, #tpu.memory_space<vmem>>, %arg3: memref<16x48xbf16, #tpu.memory_space<vmem>>, %arg4: memref<16x1xf32, #tpu.memory_space<vmem>>, %arg5: memref<1x16x128xf32, #tpu.memory_space<vmem>>, %arg6: memref<1x16x1xf32, #tpu.memory_space<vmem>>, %arg7: memref<1x16x1xf32, #tpu.memory_space<vmem>>) attributes {dimension_semantics = [#tpu.dimension_semantics<parallel>, #tpu.dimension_semantics<arbitrary>], iteration_bounds = array<i64: 2, 1>, scalar_prefetch = 0 : i64, scratch_operands = 0 : i64, tpu.core_type = #tpu.core_type<tc>, window_params = [{transform_indices = @transform_0, window_bounds = array<i64: 1, 48, 128>}, {pipeline_mode = #tpu.pipeline_mode<synchronous>, transform_indices = @transform_1, window_bounds = array<i64: 16, 48>}, {pipeline_mode = #tpu.pipeline_mode<synchronous>, transform_indices = @transform_2, window_bounds = array<i64: 16, 1>}, {transform_indices = @transform_3, window_bounds = array<i64: 1, 16, 128>}, {transform_indices = @transform_4, window_bounds = array<i64: 1, 16, 1>}, {transform_indices = @transform_5, window_bounds = array<i64: 1, 16, 1>}]} {
    %c0 = arith.constant 0 : index
    %c0_0 = arith.constant 0 : index
    %0 = vector.load %arg3[%c0, %c0_0] : memref<16x48xbf16, #tpu.memory_space<vmem>>, vector<16x48xbf16>
    %c0_1 = arith.constant 0 : index
    %c0_2 = arith.constant 0 : index
    %c0_3 = arith.constant 0 : index
    %1 = vector.load %arg2[%c0_1, %c0_2, %c0_3] : memref<1x48x128xbf16, #tpu.memory_space<vmem>>, vector<1x48x128xbf16>
    %2 = vector.shape_cast %1 : vector<1x48x128xbf16> to vector<48x128xbf16>
    %cst = arith.constant dense<0.000000e+00> : vector<16x128xf32>
    %3 = tpu.matmul %0, %2, %cst {dimension_numbers = #tpu.dot_dimension_numbers<[1], [0], [0], [1], [0, 0, 1, 1], [], []>} : vector<16x48xbf16>, vector<48x128xbf16>, vector<16x128xf32> -> vector<16x128xf32>
    %c0_4 = arith.constant 0 : index
    %c0_5 = arith.constant 0 : index
    %4 = vector.load %arg4[%c0_4, %c0_5] : memref<16x1xf32, #tpu.memory_space<vmem>>, vector<16x1xf32>
    %5 = vector.broadcast %4 : vector<16x1xf32> to vector<16x128xf32>
    %6 = arith.addf %3, %5 : vector<16x128xf32>
    %c0_6 = arith.constant 0 : index
    %c0_7 = arith.constant 0 : index
    %c0_8 = arith.constant 0 : index
    %7 = vector.load %arg5[%c0_6, %c0_7, %c0_8] : memref<1x16x128xf32, #tpu.memory_space<vmem>>, vector<1x16x128xf32>
    %8 = vector.shape_cast %7 : vector<1x16x128xf32> to vector<16x128xf32>
    %9 = vector.shape_cast %6 : vector<16x128xf32> to vector<1x16x128xf32>
    tpu.vector_store %arg5[%c0_6, %c0_7, %c0_8], %9 {strides = array<i32>} : memref<1x16x128xf32, #tpu.memory_space<vmem>>, vector<1x16x128xf32>,
    %c0_i32 = arith.constant 0 : i32
    %10 = arith.cmpi eq, %arg1, %c0_i32 : i32
    %11 = arith.extui %10 : i1 to i32
    %c0_i32_9 = arith.constant 0 : i32
    %12 = arith.cmpi ne, %11, %c0_i32_9 : i32
    scf.if %12 {
      %cst_14 = arith.constant 0.000000e+00 : f32
      %19 = vector.broadcast %cst_14 : f32 to vector<16x1xf32>
      %c0_15 = arith.constant 0 : index
      %c0_16 = arith.constant 0 : index
      %c0_17 = arith.constant 0 : index
      %20 = vector.load %arg6[%c0_15, %c0_16, %c0_17] : memref<1x16x1xf32, #tpu.memory_space<vmem>>, vector<1x16x1xf32>
      %21 = vector.shape_cast %20 : vector<1x16x1xf32> to vector<16x1xf32>
      %22 = vector.shape_cast %19 : vector<16x1xf32> to vector<1x16x1xf32>
      tpu.vector_store %arg6[%c0_15, %c0_16, %c0_17], %22 {strides = array<i32>} : memref<1x16x1xf32, #tpu.memory_space<vmem>>, vector<1x16x1xf32>,
      %cst_18 = arith.constant 0.000000e+00 : f32
      %23 = vector.broadcast %cst_18 : f32 to vector<16x1xf32>
      %c0_19 = arith.constant 0 : index
      %c0_20 = arith.constant 0 : index
      %c0_21 = arith.constant 0 : index
      %24 = vector.load %arg7[%c0_19, %c0_20, %c0_21] : memref<1x16x1xf32, #tpu.memory_space<vmem>>, vector<1x16x1xf32>
      %25 = vector.shape_cast %24 : vector<1x16x1xf32> to vector<16x1xf32>
      %26 = vector.shape_cast %23 : vector<16x1xf32> to vector<1x16x1xf32>
      tpu.vector_store %arg7[%c0_19, %c0_20, %c0_21], %26 {strides = array<i32>} : memref<1x16x1xf32, #tpu.memory_space<vmem>>, vector<1x16x1xf32>,
    } else {
    }
    %c0_i32_10 = arith.constant 0 : i32
    %13 = arith.cmpi ne, %arg1, %c0_i32_10 : i32
    %14 = arith.extui %13 : i1 to i32
    %c0_i32_11 = arith.constant 0 : i32
    %15 = arith.cmpi ne, %14, %c0_i32_11 : i32
    scf.if %15 {
      %c0_14 = arith.constant 0 : index
      %c0_15 = arith.constant 0 : index
      %c0_16 = arith.constant 0 : index
      %19 = vector.load %arg6[%c0_14, %c0_15, %c0_16] : memref<1x16x1xf32, #tpu.memory_space<vmem>>, vector<1x16x1xf32>
      %20 = vector.shape_cast %19 : vector<1x16x1xf32> to vector<16x1xf32>
      %cst_17 = arith.constant dense<0.000000e+00> : vector<16xf32>
      %21 = vector.multi_reduction <add>, %6, %cst_17 [1] : vector<16x128xf32> to vector<16xf32>
      %22 = vector.shape_cast %21 : vector<16xf32> to vector<16x1xf32>
      %23 = arith.addf %20, %22 : vector<16x1xf32>
      %c0_18 = arith.constant 0 : index
      %c0_19 = arith.constant 0 : index
      %c0_20 = arith.constant 0 : index
      %24 = vector.load %arg6[%c0_18, %c0_19, %c0_20] : memref<1x16x1xf32, #tpu.memory_space<vmem>>, vector<1x16x1xf32>
      %25 = vector.shape_cast %24 : vector<1x16x1xf32> to vector<16x1xf32>
      %26 = vector.shape_cast %23 : vector<16x1xf32> to vector<1x16x1xf32>
      tpu.vector_store %arg6[%c0_18, %c0_19, %c0_20], %26 {strides = array<i32>} : memref<1x16x1xf32, #tpu.memory_space<vmem>>, vector<1x16x1xf32>,
      %c0_21 = arith.constant 0 : index
      %c0_22 = arith.constant 0 : index
      %c0_23 = arith.constant 0 : index
      %27 = vector.load %arg7[%c0_21, %c0_22, %c0_23] : memref<1x16x1xf32, #tpu.memory_space<vmem>>, vector<1x16x1xf32>
      %28 = vector.shape_cast %27 : vector<1x16x1xf32> to vector<16x1xf32>
      %29 = arith.mulf %6, %6 : vector<16x128xf32>
      %cst_24 = arith.constant dense<0.000000e+00> : vector<16xf32>
      %30 = vector.multi_reduction <add>, %29, %cst_24 [1] : vector<16x128xf32> to vector<16xf32>
      %31 = vector.shape_cast %30 : vector<16xf32> to vector<16x1xf32>
      %32 = arith.addf %28, %31 : vector<16x1xf32>
      %c0_25 = arith.constant 0 : index
      %c0_26 = arith.constant 0 : index
      %c0_27 = arith.constant 0 : index
      %33 = vector.load %arg7[%c0_25, %c0_26, %c0_27] : memref<1x16x1xf32, #tpu.memory_space<vmem>>, vector<1x16x1xf32>
      %34 = vector.shape_cast %33 : vector<1x16x1xf32> to vector<16x1xf32>
      %35 = vector.shape_cast %32 : vector<16x1xf32> to vector<1x16x1xf32>
      tpu.vector_store %arg7[%c0_25, %c0_26, %c0_27], %35 {strides = array<i32>} : memref<1x16x1xf32, #tpu.memory_space<vmem>>, vector<1x16x1xf32>,
    } else {
    }
    %c0_i32_12 = arith.constant 0 : i32
    %16 = arith.cmpi eq, %arg1, %c0_i32_12 : i32
    %17 = arith.extui %16 : i1 to i32
    %c0_i32_13 = arith.constant 0 : i32
    %18 = arith.cmpi ne, %17, %c0_i32_13 : i32
    scf.if %18 {
      %19 = tpu.iota {dimensions = array<i32: 1>} : vector<16x128xi32>
      %c64_i32 = arith.constant 64 : i32
      %20 = vector.broadcast %c64_i32 : i32 to vector<16x128xi32>
      %21 = arith.cmpi slt, %19, %20 : vector<16x128xi32>
      %cst_14 = arith.constant 0.000000e+00 : f32
      %22 = vector.broadcast %cst_14 : f32 to vector<16x128xf32>
      %23 = arith.select %21, %6, %22 : vector<16x128xi1>, vector<16x128xf32>
      %c0_15 = arith.constant 0 : index
      %c0_16 = arith.constant 0 : index
      %c0_17 = arith.constant 0 : index
      %24 = vector.load %arg6[%c0_15, %c0_16, %c0_17] : memref<1x16x1xf32, #tpu.memory_space<vmem>>, vector<1x16x1xf32>
      %25 = vector.shape_cast %24 : vector<1x16x1xf32> to vector<16x1xf32>
      %cst_18 = arith.constant dense<0.000000e+00> : vector<16xf32>
      %26 = vector.multi_reduction <add>, %23, %cst_18 [1] : vector<16x128xf32> to vector<16xf32>
      %27 = vector.shape_cast %26 : vector<16xf32> to vector<16x1xf32>
      %28 = arith.addf %25, %27 : vector<16x1xf32>
      %c0_19 = arith.constant 0 : index
      %c0_20 = arith.constant 0 : index
      %c0_21 = arith.constant 0 : index
      %29 = vector.load %arg6[%c0_19, %c0_20, %c0_21] : memref<1x16x1xf32, #tpu.memory_space<vmem>>, vector<1x16x1xf32>
      %30 = vector.shape_cast %29 : vector<1x16x1xf32> to vector<16x1xf32>
      %31 = vector.shape_cast %28 : vector<16x1xf32> to vector<1x16x1xf32>
      tpu.vector_store %arg6[%c0_19, %c0_20, %c0_21], %31 {strides = array<i32>} : memref<1x16x1xf32, #tpu.memory_space<vmem>>, vector<1x16x1xf32>,
      %c0_22 = arith.constant 0 : index
      %c0_23 = arith.constant 0 : index
      %c0_24 = arith.constant 0 : index
      %32 = vector.load %arg7[%c0_22, %c0_23, %c0_24] : memref<1x16x1xf32, #tpu.memory_space<vmem>>, vector<1x16x1xf32>
      %33 = vector.shape_cast %32 : vector<1x16x1xf32> to vector<16x1xf32>
      %34 = arith.mulf %23, %23 : vector<16x128xf32>
      %cst_25 = arith.constant dense<0.000000e+00> : vector<16xf32>
      %35 = vector.multi_reduction <add>, %34, %cst_25 [1] : vector<16x128xf32> to vector<16xf32>
      %36 = vector.shape_cast %35 : vector<16xf32> to vector<16x1xf32>
      %37 = arith.addf %33, %36 : vector<16x1xf32>
      %c0_26 = arith.constant 0 : index
      %c0_27 = arith.constant 0 : index
      %c0_28 = arith.constant 0 : index
      %38 = vector.load %arg7[%c0_26, %c0_27, %c0_28] : memref<1x16x1xf32, #tpu.memory_space<vmem>>, vector<1x16x1xf32>
      %39 = vector.shape_cast %38 : vector<1x16x1xf32> to vector<16x1xf32>
      %40 = vector.shape_cast %37 : vector<16x1xf32> to vector<1x16x1xf32>
      tpu.vector_store %arg7[%c0_26, %c0_27, %c0_28], %40 {strides = array<i32>} : memref<1x16x1xf32, #tpu.memory_space<vmem>>, vector<1x16x1xf32>,
    } else {
    }
    return
  }
  func.func @transform_0(%arg0: i32, %arg1: i32) -> (i32, i32, i32) {
    %c0_i32 = arith.constant 0 : i32
    %c0_i32_0 = arith.constant 0 : i32
    return %arg0, %c0_i32, %arg1 : i32, i32, i32
  }
  func.func @transform_1(%arg0: i32, %arg1: i32) -> (i32, i32) {
    %c0_i32 = arith.constant 0 : i32
    %c0_i32_0 = arith.constant 0 : i32
    %c0_i32_1 = arith.constant 0 : i32
    return %c0_i32, %c0_i32_0 : i32, i32
  }
  func.func @transform_2(%arg0: i32, %arg1: i32) -> (i32, i32) {
    %c0_i32 = arith.constant 0 : i32
    %c0_i32_0 = arith.constant 0 : i32
    %c0_i32_1 = arith.constant 0 : i32
    return %c0_i32, %c0_i32_0 : i32, i32
  }
  func.func @transform_3(%arg0: i32, %arg1: i32) -> (i32, i32, i32) {
    %c0_i32 = arith.constant 0 : i32
    %c0_i32_0 = arith.constant 0 : i32
    return %arg0, %c0_i32, %arg1 : i32, i32, i32
  }
  func.func @transform_4(%arg0: i32, %arg1: i32) -> (i32, i32, i32) {
    %c0_i32 = arith.constant 0 : i32
    %c0_i32_0 = arith.constant 0 : i32
    %c0_i32_1 = arith.constant 0 : i32
    return %arg0, %c0_i32, %c0_i32_0 : i32, i32, i32
  }
  func.func @transform_5(%arg0: i32, %arg1: i32) -> (i32, i32, i32) {
    %c0_i32 = arith.constant 0 : i32
    %c0_i32_0 = arith.constant 0 : i32
    %c0_i32_1 = arith.constant 0 : i32
    return %arg0, %c0_i32, %c0_i32_0 : i32, i32, i32
  }
}

</mosaic_0001>

<llo_original>
// kernel: tpu_custom_call.1
$region0: #{tpu_custom_call.1}
  #allocation0 [shape = 'u32[]', space=smem, size = 0x4, offset = 0x4, fixed_abs, tag = 'smem constant byte address 0x4 - core index']
  #allocation1 [shape = 'u32[72,128]{1,0:T(1,128)}', space=vmem, size = 0x9000, scoped, tag = 'internal scratch']
  %s0 = inlined_call_operand.hbm [shape: bf16[2,48,128], index: 0, kind: input, shape index: {}]
  %s1 = inlined_call_operand.vmem [shape: bf16[16,48], index: 1, kind: input, shape index: {}]
  %s2 = inlined_call_operand.vmem [shape: f32[16,1], index: 2, kind: input, shape index: {}]
  %s3 = inlined_call_operand.hbm [shape: f32[2,16,128], index: 3, kind: output, shape index: {0}]
  %s4 = inlined_call_operand.vmem [shape: f32[2,16,1], index: 4, kind: output, shape index: {1}]
  %s5 = inlined_call_operand.vmem [shape: f32[2,16,1], index: 5, kind: output, shape index: {2}]
  %6 = xla_tuple %s3, %s4, %s5
  %s7 = sld [smem:[#allocation0]]
  $region77: #{tpu_custom_call.1} parent=0
    _
  %s9 = ssub.s32 1, %s7
  %s10 = scalar_select 0, %s9, %s7
  $region1: #{tpu_custom_call.1} parent=0
    #allocation2 [shape = 'u8[24576]{0}', space=vmem, size = 0x6000, scoped, tag = 'input window, operand 0']
    #allocation3 [shape = 's32[2]{0}', space=sflag, size = 0x8, scoped, tag = 'scoped memory for tpu_custom_call.1']
    #allocation4 [shape = 's32[2]{0}', space=sflag, size = 0x8, scoped, tag = 'scoped memory for tpu_custom_call.1']
    #allocation5 [shape = 'u8[16384]{0}', space=vmem, size = 0x4000, scoped, tag = 'output window, operand 0']
    %11 = vsyncpa [#allocation3], 0
    %s12 = scalar_lea.sflag [#allocation3], 1
    %13 = vsyncpa %s12, 0
    %14 = vsyncpa [#allocation4], 0
    %s15 = scalar_lea.sflag [#allocation4], 1
    %16 = vsyncpa %s15, 0
    loop: start=0, step=1, limit=4
    $region2: #{tpu_custom_call.1} parent=1 // loop_pre_header
      _
    $region3: #{tpu_custom_call.1} parent=1 // loop_header
      %s18 = sphi 0, %s22
      %p19 = scmp.ge.s32.totalorder %s18, 4
      %s25 = sphi 0, %s37
      %s26 = sphi 0, %s33
      %s27 = sphi 0, %s25
      %s28 = sphi 0, %s26
      %s29 = sphi 0, %s27
      %s30 = sphi 0, %s28
      %s42 = sphi 0, %s44
      %s45 = sphi 0, %s42
      %s46 = sphi 0, %s45
      %s62 = sphi 0, %s46
      %s66 = sphi 0, %s66
      %s68 = sphi 0, %s66
      %s69 = sphi 0, %s68
      %s83 = sphi 0, %s69
      %s87 = sphi 0, %s87
      %s89 = sphi 0, %s87
      %s90 = sphi 0, %s89
      %s104 = sphi 0, %s90
      %s112 = sphi 0, %s114
      %s115 = sphi 0, %s112
      %s116 = sphi 0, %s115
      %s132 = sphi 0, %s116
      %s138 = sphi 0, %s140
      %s141 = sphi 0, %s138
      %s142 = sphi 0, %s141
      %s158 = sphi 0, %s142
      %s164 = sphi 0, %s166
      %s167 = sphi 0, %s164
      %s168 = sphi 0, %s167
      %s184 = sphi 0, %s168
    $region4: #{tpu_custom_call.1} parent=1 // loop_header_branch
      %21 = sbr.rel (%p19) target = $region8
    $region5: #{tpu_custom_call.1} parent=1 // loop_body
      %s23 = ssub.s32 %s18, 1
      %s24 = ssub.s32 %s18, 2
      %s31 = sadd.s32 1, %s26
      %p32 = scmp.ge.s32.totalorder %s31, 1
      %s33 = scalar_select %p32, 0, %s31
      %s34 = sadd.s32 1, %s25
      %s35 = scalar_select %p32, %s34, %s25
      %p36 = scmp.ge.s32.totalorder %s35, 2
      %s37 = scalar_select %p36, 0, %s35
      %s38 = ssub.s32 %s25, %s37
      %s39 = ssub.s32 %s26, %s33
      %s40 = sor.u32 %s38, %s39
      %p41 = scmp.eq.s32.totalorder %s40, 0
      %s43 = sadd.s32 %s42, 1
      %s44 = scalar_select %p41, %s42, %s43
      %p47 = pneg %p41
      %p48 = scmp.eq.s32.totalorder %s18, 1
      %p49 = por %p47, %p48
      %p50 = scmp.ne.s32.totalorder %s42, %s45
      %p51 = scmp.eq.s32.totalorder %s18, 0
      %p52 = por %p50, %p51
      %p53 = scmp.ne.s32.totalorder %s42, %s45
      %p54 = scmp.eq.s32.totalorder %s23, 1
      %p55 = por %p53, %p54
      %p56 = scmp.ne.s32.totalorder %s45, %s46
      %p57 = scmp.eq.s32.totalorder %s23, 0
      %p58 = por %p56, %p57
      %p59 = scmp.ne.s32.totalorder %s45, %s46
      %p60 = scmp.eq.s32.totalorder %s24, 1
      %p61 = por %p59, %p60
      %p63 = scmp.ne.s32.totalorder %s46, %s62
      %p64 = scmp.eq.s32.totalorder %s24, 0
      %p65 = por %p63, %p64
      %s67 = sadd.s32 %s66, 1
      %p70 = scmp.eq.s32.totalorder %s18, 1
      %p71 = scmp.ne.s32.totalorder %s66, %s68
      %p72 = scmp.eq.s32.totalorder %s18, 0
      %p73 = por %p71, %p72
      %p74 = scmp.ne.s32.totalorder %s66, %s68
      %p75 = scmp.eq.s32.totalorder %s23, 1
      %p76 = por %p74, %p75
      %p77 = scmp.ne.s32.totalorder %s68, %s69
      %p78 = scmp.eq.s32.totalorder %s23, 0
      %p79 = por %p77, %p78
      %p80 = scmp.ne.s32.totalorder %s68, %s69
      %p81 = scmp.eq.s32.totalorder %s24, 1
      %p82 = por %p80, %p81
      %p84 = scmp.ne.s32.totalorder %s69, %s83
      %p85 = scmp.eq.s32.totalorder %s24, 0
      %p86 = por %p84, %p85
      %s88 = sadd.s32 %s87, 1
      %p91 = scmp.eq.s32.totalorder %s18, 1
      %p92 = scmp.ne.s32.totalorder %s87, %s89
      %p93 = scmp.eq.s32.totalorder %s18, 0
      %p94 = por %p92, %p93
      %p95 = scmp.ne.s32.totalorder %s87, %s89
      %p96 = scmp.eq.s32.totalorder %s23, 1
      %p97 = por %p95, %p96
      %p98 = scmp.ne.s32.totalorder %s89, %s90
      %p99 = scmp.eq.s32.totalorder %s23, 0
      %p100 = por %p98, %p99
      %p101 = scmp.ne.s32.totalorder %s89, %s90
      %p102 = scmp.eq.s32.totalorder %s24, 1
      %p103 = por %p101, %p102
      %p105 = scmp.ne.s32.totalorder %s90, %s104
      %p106 = scmp.eq.s32.totalorder %s24, 0
      %p107 = por %p105, %p106
      %s108 = ssub.s32 %s25, %s37
      %s109 = ssub.s32 %s26, %s33
      %s110 = sor.u32 %s108, %s109
      %p111 = scmp.eq.s32.totalorder %s110, 0
      %s113 = sadd.s32 %s112, 1
      %s114 = scalar_select %p111, %s112, %s113
      %p117 = pneg %p111
      %p118 = scmp.eq.s32.totalorder %s18, 1
      %p119 = por %p117, %p118
      %p120 = scmp.ne.s32.totalorder %s112, %s115
      %p121 = scmp.eq.s32.totalorder %s18, 0
      %p122 = por %p120, %p121
      %p123 = scmp.ne.s32.totalorder %s112, %s115
      %p124 = scmp.eq.s32.totalorder %s23, 1
      %p125 = por %p123, %p124
      %p126 = scmp.ne.s32.totalorder %s115, %s116
      %p127 = scmp.eq.s32.totalorder %s23, 0
      %p128 = por %p126, %p127
      %p129 = scmp.ne.s32.totalorder %s115, %s116
      %p130 = scmp.eq.s32.totalorder %s24, 1
      %p131 = por %p129, %p130
      %p133 = scmp.ne.s32.totalorder %s116, %s132
      %p134 = scmp.eq.s32.totalorder %s24, 0
      %p135 = por %p133, %p134
      %s136 = ssub.s32 %s25, %s37
      %p137 = scmp.eq.s32.totalorder %s136, 0
      %s139 = sadd.s32 %s138, 1
      %s140 = scalar_select %p137, %s138, %s139
      %p143 = pneg %p137
      %p144 = scmp.eq.s32.totalorder %s18, 1
      %p145 = por %p143, %p144
      %p146 = scmp.ne.s32.totalorder %s138, %s141
      %p147 = scmp.eq.s32.totalorder %s18, 0
      %p148 = por %p146, %p147
      %p149 = scmp.ne.s32.totalorder %s138, %s141
      %p150 = scmp.eq.s32.totalorder %s23, 1
      %p151 = por %p149, %p150
      %p152 = scmp.ne.s32.totalorder %s141, %s142
      %p153 = scmp.eq.s32.totalorder %s23, 0
      %p154 = por %p152, %p153
      %p155 = scmp.ne.s32.totalorder %s141, %s142
      %p156 = scmp.eq.s32.totalorder %s24, 1
      %p157 = por %p155, %p156
      %p159 = scmp.ne.s32.totalorder %s142, %s158
      %p160 = scmp.eq.s32.totalorder %s24, 0
      %p161 = por %p159, %p160
      %s162 = ssub.s32 %s25, %s37
      %p163 = scmp.eq.s32.totalorder %s162, 0
      %s165 = sadd.s32 %s164, 1
      %s166 = scalar_select %p163, %s164, %s165
      %p169 = pneg %p163
      %p170 = scmp.eq.s32.totalorder %s18, 1
      %p171 = por %p169, %p170
      %p172 = scmp.ne.s32.totalorder %s164, %s167
      %p173 = scmp.eq.s32.totalorder %s18, 0
      %p174 = por %p172, %p173
      %p175 = scmp.ne.s32.totalorder %s164, %s167
      %p176 = scmp.eq.s32.totalorder %s23, 1
      %p177 = por %p175, %p176
      %p178 = scmp.ne.s32.totalorder %s167, %s168
      %p179 = scmp.eq.s32.totalorder %s23, 0
      %p180 = por %p178, %p179
      %p181 = scmp.ne.s32.totalorder %s167, %s168
      %p182 = scmp.eq.s32.totalorder %s24, 1
      %p183 = por %p181, %p182
      %p185 = scmp.ne.s32.totalorder %s168, %s184
      %p186 = scmp.eq.s32.totalorder %s24, 0
      %p187 = por %p185, %p186
      %p188 = scmp.le.s32.totalorder 1, %s18
      %p189 = scmp.lt.s32.totalorder %s18, 3
      %p190 = pnand %p188, %p189
      %p191 = pneg %p190
      // Predicated region
      $region9: #{tpu_custom_call.1} parent=5 // pred_check
        _
      $region10: #{tpu_custom_call.1} parent=5 // pred_check_branch
        %193 = sbr.rel (%p190) target = $region12
      $region11: #{tpu_custom_call.1} parent=5 // pred_region
        %s194 = ssub.s32 %s18, 1
        // Predicated region
        $region13: #{tpu_custom_call.1} parent=11 // pred_check
          %p195 = pneg %p79
        $region14: #{tpu_custom_call.1} parent=11 // pred_check_branch
          %197 = sbr.rel (%p195) target = $region16
        $region15: #{tpu_custom_call.1} parent=11 // pred_region
          _
        $region16: #{tpu_custom_call.1} parent=11 // pred_fallthru
          _
        // Predicated region
        $region17: #{tpu_custom_call.1} parent=11 // pred_check
          %p198 = pneg %p100
        $region18: #{tpu_custom_call.1} parent=11 // pred_check_branch
          %200 = sbr.rel (%p198) target = $region20
        $region19: #{tpu_custom_call.1} parent=11 // pred_region
          _
        $region20: #{tpu_custom_call.1} parent=11 // pred_fallthru
          _
      $region12: #{tpu_custom_call.1} parent=5 // pred_fallthru
        _
      %p201 = scmp.lt.s32.totalorder %s18, 2
      // Predicated region
      $region21: #{tpu_custom_call.1} parent=5 // pred_check
        %p202 = pneg %p201
      $region22: #{tpu_custom_call.1} parent=5 // pred_check_branch
        %204 = sbr.rel (%p202) target = $region24
      $region23: #{tpu_custom_call.1} parent=5 // pred_region
        // Predicated region
        $region25: #{tpu_custom_call.1} parent=23 // pred_check
          %p205 = pneg %p52
        $region26: #{tpu_custom_call.1} parent=23 // pred_check_branch
          %207 = sbr.rel (%p205) target = $region28
        $region27: #{tpu_custom_call.1} parent=23 // pred_region
          %s208 = sand.u32 %s42, 1
          %s209 = scalar_lea.sflag [#allocation3], %s208
          %s210 = sand.u32 %s42, 1
          %s211 = smul.addr %s210, 24
          %s212 = scalar_lea.vmem [#allocation2], %s211
          %214 = vsyncadd %s209, 0
          %s215 = smul.addr %s25, 6
          %s216 = sadd.s32 %s26, %s215
          %s217 = smul.addr %s216, 4
          %s218 = scalar_lea.hbm %s0, %s217
          %s219 = sshll.u32 %s218, 4
          %s220 = int_to_ptr.hbm [resolvable:$true] %s219
          %s221 = sshll.u32 %s212, 4
          %s222 = int_to_ptr.vmem [resolvable:$true] %s221
          %227 = dma.hbm_to_vmem [thread:$0]  %s220, 384, %s222, %s209, 64, 64, 4
        $region28: #{tpu_custom_call.1} parent=23 // pred_fallthru
          _
      $region24: #{tpu_custom_call.1} parent=5 // pred_fallthru
        _
      %p228 = scmp.le.s32.totalorder 1, %s18
      %p229 = scmp.lt.s32.totalorder %s18, 3
      %p230 = pnand %p228, %p229
      %p231 = pneg %p230
      // Predicated region
      $region29: #{tpu_custom_call.1} parent=5 // pred_check
        _
      $region30: #{tpu_custom_call.1} parent=5 // pred_check_branch
        %233 = sbr.rel (%p230) target = $region32
      $region31: #{tpu_custom_call.1} parent=5 // pred_region
        %s234 = ssub.s32 %s18, 1
        %s235 = sand.u32 %s45, 1
        %s236 = scalar_lea.sflag [#allocation3], %s235
        %s237 = sand.u32 %s45, 1
        %s238 = smul.addr %s237, 24
        %s239 = scalar_lea.vmem [#allocation2], %s238
        // Predicated region
        $region33: #{tpu_custom_call.1} parent=31 // pred_check
          %p240 = pneg %p58
        $region34: #{tpu_custom_call.1} parent=31 // pred_check_branch
          %242 = sbr.rel (%p240) target = $region36
        $region35: #{tpu_custom_call.1} parent=31 // pred_region
          %244 = dma.done %s236, 384
        $region36: #{tpu_custom_call.1} parent=31 // pred_fallthru
          _
        %s245 = sand.u32 %s45, 1
        %s246 = scalar_lea.sflag [#allocation3], %s245
        %s247 = sand.u32 %s45, 1
        %s248 = smul.addr %s247, 24
        %s249 = scalar_lea.vmem [#allocation2], %s248
        %p250 = pneg %p58
        %p251 = pneg %p55
        %p252 = pneg %p79
        %p253 = pneg %p76
        %p254 = pneg %p100
        %p255 = pneg %p97
        %p256 = pneg %p128
        %p257 = pneg %p125
        %s258 = sand.u32 %s115, 1
        %s259 = scalar_lea.sflag [#allocation4], %s258
        %s260 = sand.u32 %s115, 1
        %s261 = smul.addr %s260, 16
        %s262 = scalar_lea.vmem [#allocation5], %s261
        %p263 = pneg %p154
        %p264 = pneg %p151
        %p265 = scmp.lt.s32.totalorder %s27, 1
        %s266 = scalar_select %p265, %s27, 1
        %s267 = smul.addr %s266, 2
        %s268 = smul.addr %s267, 8
        %s269 = scalar_lea.vmem %s4, %s268
        %p270 = pneg %p180
        %p271 = pneg %p177
        %p272 = scmp.lt.s32.totalorder %s27, 1
        %s273 = scalar_select %p272, %s27, 1
        %s274 = smul.addr %s273, 2
        %s275 = smul.addr %s274, 8
        %s276 = scalar_lea.vmem %s5, %s275
        %p277 = scmp.lt.s32.totalorder %s27, 1
        %s278 = scalar_select %p277, %s27, 1
        %s279 = smul.addr %s278, 2
        %s280 = smul.addr %s279, 8
        %s281 = scalar_lea.vmem %s4, %s280
        %p282 = scmp.lt.s32.totalorder %s27, 1
        %s283 = scalar_select %p282, %s27, 1
        %s284 = smul.addr %s283, 2
        %s285 = smul.addr %s284, 8
        %s286 = scalar_lea.vmem %s5, %s285
        %v288 = vld [vmem:[%s1] sm:$0xf]
        %v289 = vld [vmem:[%s1 + $0x4] sm:$0xf]
        %v290 = vld [vmem:[%s239] sm:$0xf]
        %v291 = vld [vmem:[%s239 + $0x4] sm:$0xf]
        %v292 = vld [vmem:[%s239 + $0x8] sm:$0xf]
        %v293 = vld [vmem:[%s239 + $0xc] sm:$0xf]
        %v294 = vld [vmem:[%s239 + $0x10] sm:$0xf]
        %v295 = vld [vmem:[%s239 + $0x14] sm:$0xf]
        %v296 = vld [vmem:[%s2] sm:$0xff]
        %v297 = vld [vmem:[%s2 + $0x8] sm:$0xff]
        %299 = vset.pattern.permute.xlu0 0
        %300 = vperm.xlu0 %299, %v296
        %v301 = vpop.permute.xlu0 %300
        %304 = vset.pattern.permute.xlu0 0
        %305 = vperm.xlu0 %304, %v297
        %v306 = vpop.permute.xlu0 %305
        %v310 = vunpack.c.l.b16 %v288
        %v311 = vunpack.c.l.b16 %v289
        %v312 = vpack.c.b16 %v311, %v310
        %v319 = vunpack.c.l.b16 %v290
        %v320 = vunpack.c.l.b16 %v291
        %v321 = vunpack.c.l.b16 %v292
        %v322 = vunpack.c.l.b16 %v293
        %v323 = vunpack.c.l.b16 %v294
        %v324 = vunpack.c.l.b16 %v295
        %v325 = vpack.c.b16 %v320, %v319
        %v326 = vpack.c.b16 %v322, %v321
        %v327 = vpack.c.b16 %v324, %v323
        %vm331 = vcmask 392192
        %v333 = vsel %vm331, %v312, 0
        %335 = vmatpush.bf16.msra.mxu0 0
        %336 = vmatpush.bf16.msra.mxu0 0
        %337 = vmatpush.bf16.msra.mxu0 0
        %338 = vmatpush.bf16.msra.mxu0 0
        %339 = vmatpush.bf16.msra.mxu0 0
        %340 = vmatpush.bf16.msra.mxu0 %v327
        %341 = vmatpush.bf16.msra.mxu0 %v326
        %342 = vmatpush.bf16.msra.mxu0 %v325
        %343 = vmatmul.bf16.gmra.mxu0 %v333
        %v344 = vpop.f32.mrf.mxu0
        %v345 = vadd.f32 %v301, %v344
        %v346 = vpop.f32.mrf.mxu0
        %v347 = vadd.f32 %v306, %v346
        %348 = vdwg.mxu0
        %349 = vst [vmem:[%s262] sm:$0xff] %v345
        %350 = vst [vmem:[%s262 + $0x8] sm:$0xff] %v347
        %p351 = scmp.eq.s32.totalorder %s28, 0
        // Predicated region
        $region37: #{tpu_custom_call.1} parent=31 // pred_check
          %p352 = pneg %p351
        $region38: #{tpu_custom_call.1} parent=31 // pred_check_branch
          %354 = sbr.rel (%p352) target = $region40
        $region39: #{tpu_custom_call.1} parent=31 // pred_region
          %vm355 = vcmask 7168
          %356 = vst.msk [vmem:[%s281] sm:$0xff] %vm355, 0.0
          %357 = vst.msk [vmem:[%s281 + $0x8] sm:$0xff] %vm355, 0.0
          %358 = vst.msk [vmem:[%s286] sm:$0xff] %vm355, 0.0
          %359 = vst.msk [vmem:[%s286 + $0x8] sm:$0xff] %vm355, 0.0
        $region40: #{tpu_custom_call.1} parent=31 // pred_fallthru
          _
        %p360 = scmp.ne.s32.totalorder %s28, 0
        // Predicated region
        $region41: #{tpu_custom_call.1} parent=31 // pred_check
          %p361 = pneg %p360
        $region42: #{tpu_custom_call.1} parent=31 // pred_check_branch
          %363 = sbr.rel (%p361) target = $region44
        $region43: #{tpu_custom_call.1} parent=31 // pred_region
          %v364 = vld [vmem:[%s281] sm:$0xff]
          %v365 = vld [vmem:[%s281 + $0x8] sm:$0xff]
          %366 = vadd.xlane.f32.xlu0 %v345
          %v367 = vpop.xlane.xlu0 %366
          %368 = vadd.xlane.f32.xlu0 %v347
          %v369 = vpop.xlane.xlu0 %368
          %v370 = vadd.f32 %v364, %v367
          %v371 = vadd.f32 %v365, %v369
          %vm372 = vcmask 7168
          %373 = vst.msk [vmem:[%s281] sm:$0xff] %vm372, %v370
          %374 = vst.msk [vmem:[%s281 + $0x8] sm:$0xff] %vm372, %v371
          %v375 = vld [vmem:[%s286] sm:$0xff]
          %v376 = vld [vmem:[%s286 + $0x8] sm:$0xff]
          %v377 = vmul.f32 %v345, %v345
          %v378 = vmul.f32 %v347, %v347
          %379 = vadd.xlane.f32.xlu0 %v377
          %v380 = vpop.xlane.xlu0 %379
          %381 = vadd.xlane.f32.xlu0 %v378
          %v382 = vpop.xlane.xlu0 %381
          %v383 = vadd.f32 %v375, %v380
          %v384 = vadd.f32 %v376, %v382
          %385 = vst.msk [vmem:[%s286] sm:$0xff] %vm372, %v383
          %386 = vst.msk [vmem:[%s286 + $0x8] sm:$0xff] %vm372, %v384
        $region44: #{tpu_custom_call.1} parent=31 // pred_fallthru
          _
        // Predicated region
        $region45: #{tpu_custom_call.1} parent=31 // pred_check
          %p387 = pneg %p351
        $region46: #{tpu_custom_call.1} parent=31 // pred_check_branch
          %389 = sbr.rel (%p387) target = $region48
        $region47: #{tpu_custom_call.1} parent=31 // pred_region
          %v390 = vlaneseq
          %v391 = vand.u32 %v390, 127
          %vm392 = vcmp.lt.s32.totalorder %v391, 64
          %v393 = vsel %vm392, %v345, 0.0
          %v394 = vsel %vm392, %v347, 0.0
          %v395 = vld [vmem:[%s281] sm:$0xff]
          %v396 = vld [vmem:[%s281 + $0x8] sm:$0xff]
          %397 = vadd.xlane.f32.xlu0 %v393
          %v398 = vpop.xlane.xlu0 %397
          %399 = vadd.xlane.f32.xlu0 %v394
          %v400 = vpop.xlane.xlu0 %399
          %v401 = vadd.f32 %v395, %v398
          %v402 = vadd.f32 %v396, %v400
          %vm403 = vcmask 7168
          %404 = vst.msk [vmem:[%s281] sm:$0xff] %vm403, %v401
          %405 = vst.msk [vmem:[%s281 + $0x8] sm:$0xff] %vm403, %v402
          %v406 = vld [vmem:[%s286] sm:$0xff]
          %v407 = vld [vmem:[%s286 + $0x8] sm:$0xff]
          %v408 = vmul.f32 %v393, %v393
          %v409 = vmul.f32 %v394, %v394
          %410 = vadd.xlane.f32.xlu0 %v408
          %v411 = vpop.xlane.xlu0 %410
          %412 = vadd.xlane.f32.xlu0 %v409
          %v413 = vpop.xlane.xlu0 %412
          %v414 = vadd.f32 %v406, %v411
          %v415 = vadd.f32 %v407, %v413
          %416 = vst.msk [vmem:[%s286] sm:$0xff] %vm403, %v414
          %417 = vst.msk [vmem:[%s286 + $0x8] sm:$0xff] %vm403, %v415
        $region48: #{tpu_custom_call.1} parent=31 // pred_fallthru
          _
        %s418 = sand.u32 %s115, 1
        %s419 = scalar_lea.sflag [#allocation4], %s418
        %s420 = sand.u32 %s115, 1
        %s421 = smul.addr %s420, 16
        %s422 = scalar_lea.vmem [#allocation5], %s421
        %p423 = scmp.lt.s32.totalorder %s27, 1
        %s424 = scalar_select %p423, %s27, 1
        %s425 = smul.addr %s424, 2
        %s426 = smul.addr %s425, 8
        %s427 = scalar_lea.vmem %s4, %s426
        %p428 = scmp.lt.s32.totalorder %s27, 1
        %s429 = scalar_select %p428, %s27, 1
        %s430 = smul.addr %s429, 2
        %s431 = smul.addr %s430, 8
        %s432 = scalar_lea.vmem %s5, %s431
        // Predicated region
        $region49: #{tpu_custom_call.1} parent=31 // pred_check
          %p433 = pneg %p125
        $region50: #{tpu_custom_call.1} parent=31 // pred_check_branch
          %435 = sbr.rel (%p433) target = $region52
        $region51: #{tpu_custom_call.1} parent=31 // pred_region
          %437 = vsyncadd %s419, 0
          %s438 = smul.addr %s27, 2
          %s439 = sadd.s32 %s28, %s438
          %s440 = smul.addr %s439, 8
          %s441 = scalar_lea.hbm %s3, %s440
          %s442 = sshll.u32 %s422, 4
          %s443 = int_to_ptr.vmem [resolvable:$true] %s442
          %s444 = sshll.u32 %s441, 4
          %s445 = int_to_ptr.hbm [resolvable:$true] %s444
          %450 = dma.vmem_to_hbm [thread:$0]  %s443, 256, %s445, %s419, 128, 128, 8
        $region52: #{tpu_custom_call.1} parent=31 // pred_fallthru
          _
        // Predicated region
        $region53: #{tpu_custom_call.1} parent=31 // pred_check
          %p451 = pneg %p151
        $region54: #{tpu_custom_call.1} parent=31 // pred_check_branch
          %453 = sbr.rel (%p451) target = $region56
        $region55: #{tpu_custom_call.1} parent=31 // pred_region
          _
        $region56: #{tpu_custom_call.1} parent=31 // pred_fallthru
          _
        // Predicated region
        $region57: #{tpu_custom_call.1} parent=31 // pred_check
          %p454 = pneg %p177
        $region58: #{tpu_custom_call.1} parent=31 // pred_check_branch
          %456 = sbr.rel (%p454) target = $region60
        $region59: #{tpu_custom_call.1} parent=31 // pred_region
          _
        $region60: #{tpu_custom_call.1} parent=31 // pred_fallthru
          _
      $region32: #{tpu_custom_call.1} parent=5 // pred_fallthru
        _
      %p457 = scmp.le.s32.totalorder 2, %s18
      // Predicated region
      $region61: #{tpu_custom_call.1} parent=5 // pred_check
        %p458 = pneg %p457
      $region62: #{tpu_custom_call.1} parent=5 // pred_check_branch
        %460 = sbr.rel (%p458) target = $region64
      $region63: #{tpu_custom_call.1} parent=5 // pred_region
        %s461 = ssub.s32 %s18, 2
        // Predicated region
        $region65: #{tpu_custom_call.1} parent=63 // pred_check
          %p462 = pneg %p131
        $region66: #{tpu_custom_call.1} parent=63 // pred_check_branch
          %464 = sbr.rel (%p462) target = $region68
        $region67: #{tpu_custom_call.1} parent=63 // pred_region
          %s465 = sand.u32 %s116, 1
          %s466 = scalar_lea.sflag [#allocation4], %s465
          %s467 = sand.u32 %s116, 1
          %s468 = smul.addr %s467, 16
          %s469 = scalar_lea.vmem [#allocation5], %s468
          %471 = dma.done %s466, 256
        $region68: #{tpu_custom_call.1} parent=63 // pred_fallthru
          _
        // Predicated region
        $region69: #{tpu_custom_call.1} parent=63 // pred_check
          %p472 = pneg %p157
        $region70: #{tpu_custom_call.1} parent=63 // pred_check_branch
          %474 = sbr.rel (%p472) target = $region72
        $region71: #{tpu_custom_call.1} parent=63 // pred_region
          %p475 = scmp.lt.s32.totalorder %s29, 1
          %s476 = scalar_select %p475, %s29, 1
          %s477 = smul.addr %s476, 2
          %s478 = smul.addr %s477, 8
          %s479 = scalar_lea.vmem %s4, %s478
        $region72: #{tpu_custom_call.1} parent=63 // pred_fallthru
          _
        // Predicated region
        $region73: #{tpu_custom_call.1} parent=63 // pred_check
          %p480 = pneg %p183
        $region74: #{tpu_custom_call.1} parent=63 // pred_check_branch
          %482 = sbr.rel (%p480) target = $region76
        $region75: #{tpu_custom_call.1} parent=63 // pred_region
          %p483 = scmp.lt.s32.totalorder %s29, 1
          %s484 = scalar_select %p483, %s29, 1
          %s485 = smul.addr %s484, 2
          %s486 = smul.addr %s485, 8
          %s487 = scalar_lea.vmem %s5, %s486
        $region76: #{tpu_custom_call.1} parent=63 // pred_fallthru
          _
      $region64: #{tpu_custom_call.1} parent=5 // pred_fallthru
        _
    $region6: #{tpu_custom_call.1} parent=1 // loop_footer
      %s22 = sadd.s32 1, %s18
    $region7: #{tpu_custom_call.1} parent=1 // loop_footer_branch
      %17 = sbr.rel target = $region3
    $region8: #{tpu_custom_call.1} parent=1 // loop_exit
      _
    %488 = vsyncpa [#allocation3], 1
    %s489 = scalar_lea.sflag [#allocation3], 1
    %490 = vsyncpa %s489, 1
    %491 = vsyncpa [#allocation4], 1
    %s492 = scalar_lea.sflag [#allocation4], 1
    %493 = vsyncpa %s492, 1

</llo_original>
